<compile_context>
chip_gen: v7x
topology: tpu7x:2x2x1
jax: 0.10.0
libtpu: 0.0.40
codegen_flags: <defaults>
</compile_context>

<pallas_src>
import functools

import jax
import jax.numpy as jnp
from jax.experimental import pallas as pl
from jax.experimental.pallas import tpu as pltpu


def _erf_f32(z):
    """Abramowitz & Stegun 7.1.26 rational approximation of erf (|err| < 1.5e-7).

    Uses only VPU mul/add/select and one EUP exp, so it is guaranteed to lower
    in Mosaic and matches torch's exact (erf-based) GELU to f32 precision.
    """
    a1 = 0.254829592
    a2 = -0.284496736
    a3 = 1.421413741
    a4 = -1.453152027
    a5 = 1.061405429
    p = 0.3275911
    az = jnp.abs(z)
    t = 1.0 / (1.0 + p * az)
    poly = ((((a5 * t + a4) * t + a3) * t + a2) * t + a1) * t
    y = 1.0 - poly * jnp.exp(-az * az)
    return jnp.where(z >= 0.0, y, -y)


def _gelu_exact(x):
    # nn.GELU() default: x * 0.5 * (1 + erf(x / sqrt(2)))
    return 0.5 * x * (1.0 + _erf_f32(x * 0.7071067811865476))


def _ffn_kernel(x_ref, gamma_ref, beta_ref, w1_ref, b1_ref, w2_ref, b2_ref,
                o_ref, *, eps):
    # x_ref: (Tm, D) tile of flattened (batch*seq) rows.
    x = x_ref[...].astype(jnp.float32)

    # ---- LayerNorm over features (torch semantics: biased var, eps) — f32 ----
    mean = jnp.mean(x, axis=-1, keepdims=True)
    var = jnp.mean((x - mean) ** 2, axis=-1, keepdims=True)
    xn = (x - mean) * jax.lax.rsqrt(var + eps)
    xn = xn * gamma_ref[...] + beta_ref[...]

    # ---- Linear(dim -> hidden): bf16 MXU operands, f32 accumulation ----
    h = jnp.dot(xn.astype(jnp.bfloat16), w1_ref[...],
                preferred_element_type=jnp.float32) + b1_ref[...]

    # ---- GELU (exact) in f32 ----
    h = _gelu_exact(h)

    # ---- Linear(hidden -> dim): bf16 MXU operands, f32 accumulation ----
    out = jnp.dot(h.astype(jnp.bfloat16), w2_ref[...],
                  preferred_element_type=jnp.float32) + b2_ref[...]

    o_ref[...] = out.astype(o_ref.dtype)


def _round_up(a, b):
    return (a + b - 1) // b * b


def feed_forward(x, params, *, eps=1e-5, row_tile=256):
    """x: (..., D) float32. Returns array of the same shape/dtype."""
    orig_shape = x.shape
    D = orig_shape[-1]
    H = params["w1"].shape[-1]

    M = 1
    for s in orig_shape[:-1]:
        M *= s
    x2 = x.reshape(M, D)

    # Row tile: fill the MXU M dimension; pad rows so the tile divides evenly.
    tm = row_tile if M >= row_tile else _round_up(M, 8)
    m_pad = _round_up(M, tm)
    if m_pad != M:
        x2 = jnp.pad(x2, ((0, m_pad - M), (0, 0)))

    # Cast once in the wrapper (not per grid step inside the kernel).
    gamma = params["gamma"].reshape(1, D).astype(jnp.float32)
    beta = params["beta"].reshape(1, D).astype(jnp.float32)
    w1 = params["w1"].astype(jnp.bfloat16)           # (D, H)
    b1 = params["b1"].reshape(1, H).astype(jnp.float32)
    w2 = params["w2"].astype(jnp.bfloat16)           # (H, D)
    b2 = params["b2"].reshape(1, D).astype(jnp.float32)

    kernel = functools.partial(_ffn_kernel, eps=eps)

    out = pl.pallas_call(
        kernel,
        out_shape=jax.ShapeDtypeStruct((m_pad, D), x.dtype),
        grid_spec=pltpu.PrefetchScalarGridSpec(
            num_scalar_prefetch=0,
            grid=(m_pad // tm,),
            in_specs=[
                pl.BlockSpec((tm, D), lambda i: (i, 0)),   # x rows
                pl.BlockSpec((1, D), lambda i: (0, 0)),    # gamma
                pl.BlockSpec((1, D), lambda i: (0, 0)),    # beta
                pl.BlockSpec((D, H), lambda i: (0, 0)),    # w1 (bf16)
                pl.BlockSpec((1, H), lambda i: (0, 0)),    # b1
                pl.BlockSpec((H, D), lambda i: (0, 0)),    # w2 (bf16)
                pl.BlockSpec((1, D), lambda i: (0, 0)),    # b2
            ],
            out_specs=pl.BlockSpec((tm, D), lambda i: (i, 0)),
        ),
        compiler_params=pltpu.CompilerParams(
            dimension_semantics=("parallel",),
            vmem_limit_bytes=32 * 1024 * 1024,
        ),
    )(x2, gamma, beta, w1, b1, w2, b2)

    return out[:M].reshape(orig_shape)


def _reference(x, params, *, eps=1e-5):
    """Pure-JAX (f32) reference mirroring the PyTorch forward."""
    gamma, beta = params["gamma"], params["beta"]
    w1, b1, w2, b2 = params["w1"], params["b1"], params["w2"], params["b2"]
    mean = jnp.mean(x, axis=-1, keepdims=True)
    var = jnp.mean((x - mean) ** 2, axis=-1, keepdims=True)
    xn = (x - mean) / jnp.sqrt(var + eps) * gamma + beta
    h = xn @ w1 + b1
    h = jax.nn.gelu(h, approximate=False)   # exact erf GELU == nn.GELU()
    return h @ w2 + b2


if __name__ == "__main__":
    # Small shapes consistent with the module: dim=32, hidden_dim=128.
    B, N, D, H = 2, 8, 32, 128

    key = jax.random.PRNGKey(0)
    kx, kg, kb, k1, kb1, k2, kb2 = jax.random.split(key, 7)

    x = jax.random.normal(kx, (B, N, D), dtype=jnp.float32)
    params = {
        "gamma": 1.0 + 0.1 * jax.random.normal(kg, (D,), dtype=jnp.float32),
        "beta": 0.05 * jax.random.normal(kb, (D,), dtype=jnp.float32),
        "w1": jax.random.normal(k1, (D, H), dtype=jnp.float32) * 0.05,
        "b1": jax.random.normal(kb1, (H,), dtype=jnp.float32) * 0.01,
        "w2": jax.random.normal(k2, (H, D), dtype=jnp.float32) * 0.05,
        "b2": jax.random.normal(kb2, (D,), dtype=jnp.float32) * 0.01,
    }

    out = feed_forward(x, params)
    out = jax.block_until_ready(out)

    ref = _reference(x, params)
    assert out.shape == (B, N, D)
    max_err = float(jnp.max(jnp.abs(out - ref)))
    # bf16 MXU operands loosen tolerance vs the f32 reference.
    assert jnp.allclose(out, ref, atol=2e-2, rtol=2e-2), (
        f"mismatch vs reference, max_err={max_err}")

    print("KERNEL_OK")
</pallas_src>

<mosaic_0001>
module attributes {stable_mosaic.version = 11 : i64} {
  func.func @_ffn_kernel(%arg0: i32, %arg1: memref<16x32xf32, #tpu.memory_space<vmem>>, %arg2: memref<1x32xf32, #tpu.memory_space<vmem>>, %arg3: memref<1x32xf32, #tpu.memory_space<vmem>>, %arg4: memref<32x128xbf16, #tpu.memory_space<vmem>>, %arg5: memref<1x128xf32, #tpu.memory_space<vmem>>, %arg6: memref<128x32xbf16, #tpu.memory_space<vmem>>, %arg7: memref<1x32xf32, #tpu.memory_space<vmem>>, %arg8: memref<16x32xf32, #tpu.memory_space<vmem>>) attributes {dimension_semantics = [#tpu.dimension_semantics<parallel>], iteration_bounds = array<i64: 1>, scalar_prefetch = 0 : i64, scratch_operands = 0 : i64, tpu.core_type = #tpu.core_type<tc>, window_params = [{transform_indices = @transform_0, window_bounds = array<i64: 16, 32>}, {pipeline_mode = #tpu.pipeline_mode<synchronous>, transform_indices = @transform_1, window_bounds = array<i64: 1, 32>}, {pipeline_mode = #tpu.pipeline_mode<synchronous>, transform_indices = @transform_2, window_bounds = array<i64: 1, 32>}, {pipeline_mode = #tpu.pipeline_mode<synchronous>, transform_indices = @transform_3, window_bounds = array<i64: 32, 128>}, {pipeline_mode = #tpu.pipeline_mode<synchronous>, transform_indices = @transform_4, window_bounds = array<i64: 1, 128>}, {pipeline_mode = #tpu.pipeline_mode<synchronous>, transform_indices = @transform_5, window_bounds = array<i64: 128, 32>}, {pipeline_mode = #tpu.pipeline_mode<synchronous>, transform_indices = @transform_6, window_bounds = array<i64: 1, 32>}, {transform_indices = @transform_7, window_bounds = array<i64: 16, 32>}]} {
    %c0 = arith.constant 0 : index
    %c0_0 = arith.constant 0 : index
    %0 = vector.load %arg1[%c0, %c0_0] : memref<16x32xf32, #tpu.memory_space<vmem>>, vector<16x32xf32>
    %cst = arith.constant dense<0.000000e+00> : vector<16xf32>
    %1 = vector.multi_reduction <add>, %0, %cst [1] : vector<16x32xf32> to vector<16xf32>
    %2 = vector.shape_cast %1 : vector<16xf32> to vector<16x1xf32>
    %cst_1 = arith.constant 3.200000e+01 : f32
    %3 = vector.broadcast %cst_1 : f32 to vector<16x1xf32>
    %4 = arith.divf %2, %3 : vector<16x1xf32>
    %5 = vector.broadcast %4 : vector<16x1xf32> to vector<16x32xf32>
    %6 = arith.subf %0, %5 : vector<16x32xf32>
    %7 = arith.mulf %6, %6 : vector<16x32xf32>
    %cst_2 = arith.constant dense<0.000000e+00> : vector<16xf32>
    %8 = vector.multi_reduction <add>, %7, %cst_2 [1] : vector<16x32xf32> to vector<16xf32>
    %9 = vector.shape_cast %8 : vector<16xf32> to vector<16x1xf32>
    %cst_3 = arith.constant 3.200000e+01 : f32
    %10 = vector.broadcast %cst_3 : f32 to vector<16x1xf32>
    %11 = arith.divf %9, %10 : vector<16x1xf32>
    %12 = vector.broadcast %4 : vector<16x1xf32> to vector<16x32xf32>
    %13 = arith.subf %0, %12 : vector<16x32xf32>
    %cst_4 = arith.constant 9.99999974E-6 : f32
    %14 = vector.broadcast %cst_4 : f32 to vector<16x1xf32>
    %15 = arith.addf %11, %14 : vector<16x1xf32>
    %16 = math.rsqrt %15 : vector<16x1xf32>
    %17 = vector.broadcast %16 : vector<16x1xf32> to vector<16x32xf32>
    %18 = arith.mulf %13, %17 : vector<16x32xf32>
    %c0_5 = arith.constant 0 : index
    %c0_6 = arith.constant 0 : index
    %19 = vector.load %arg2[%c0_5, %c0_6] : memref<1x32xf32, #tpu.memory_space<vmem>>, vector<1x32xf32>
    %20 = vector.broadcast %19 : vector<1x32xf32> to vector<16x32xf32>
    %21 = arith.mulf %18, %20 : vector<16x32xf32>
    %c0_7 = arith.constant 0 : index
    %c0_8 = arith.constant 0 : index
    %22 = vector.load %arg3[%c0_7, %c0_8] : memref<1x32xf32, #tpu.memory_space<vmem>>, vector<1x32xf32>
    %23 = vector.broadcast %22 : vector<1x32xf32> to vector<16x32xf32>
    %24 = arith.addf %21, %23 : vector<16x32xf32>
    %25 = arith.truncf %24 : vector<16x32xf32> to vector<16x32xbf16>
    %c0_9 = arith.constant 0 : index
    %c0_10 = arith.constant 0 : index
    %26 = vector.load %arg4[%c0_9, %c0_10] : memref<32x128xbf16, #tpu.memory_space<vmem>>, vector<32x128xbf16>
    %cst_11 = arith.constant dense<0.000000e+00> : vector<16x128xf32>
    %27 = tpu.matmul %25, %26, %cst_11 {dimension_numbers = #tpu.dot_dimension_numbers<[1], [0], [0], [1], [0, 0, 1, 1], [], []>} : vector<16x32xbf16>, vector<32x128xbf16>, vector<16x128xf32> -> vector<16x128xf32>
    %c0_12 = arith.constant 0 : index
    %c0_13 = arith.constant 0 : index
    %28 = vector.load %arg5[%c0_12, %c0_13] : memref<1x128xf32, #tpu.memory_space<vmem>>, vector<1x128xf32>
    %29 = vector.broadcast %28 : vector<1x128xf32> to vector<16x128xf32>
    %30 = arith.addf %27, %29 : vector<16x128xf32>
    %cst_14 = arith.constant 5.000000e-01 : f32
    %31 = vector.broadcast %cst_14 : f32 to vector<16x128xf32>
    %32 = arith.mulf %31, %30 : vector<16x128xf32>
    %cst_15 = arith.constant 0.707106769 : f32
    %33 = vector.broadcast %cst_15 : f32 to vector<16x128xf32>
    %34 = arith.mulf %30, %33 : vector<16x128xf32>
    %35 = math.absf %34 : vector<16x128xf32>
    %cst_16 = arith.constant 0.327591091 : f32
    %36 = vector.broadcast %cst_16 : f32 to vector<16x128xf32>
    %37 = arith.mulf %36, %35 : vector<16x128xf32>
    %cst_17 = arith.constant 1.000000e+00 : f32
    %38 = vector.broadcast %cst_17 : f32 to vector<16x128xf32>
    %39 = arith.addf %38, %37 : vector<16x128xf32>
    %cst_18 = arith.constant 1.000000e+00 : f32
    %40 = vector.broadcast %cst_18 : f32 to vector<16x128xf32>
    %41 = arith.divf %40, %39 : vector<16x128xf32>
    %cst_19 = arith.constant 1.06140542 : f32
    %42 = vector.broadcast %cst_19 : f32 to vector<16x128xf32>
    %43 = arith.mulf %42, %41 : vector<16x128xf32>
    %cst_20 = arith.constant -1.45315206 : f32
    %44 = vector.broadcast %cst_20 : f32 to vector<16x128xf32>
    %45 = arith.addf %43, %44 : vector<16x128xf32>
    %46 = arith.mulf %45, %41 : vector<16x128xf32>
    %cst_21 = arith.constant 1.42141378 : f32
    %47 = vector.broadcast %cst_21 : f32 to vector<16x128xf32>
    %48 = arith.addf %46, %47 : vector<16x128xf32>
    %49 = arith.mulf %48, %41 : vector<16x128xf32>
    %cst_22 = arith.constant -0.284496725 : f32
    %50 = vector.broadcast %cst_22 : f32 to vector<16x128xf32>
    %51 = arith.addf %49, %50 : vector<16x128xf32>
    %52 = arith.mulf %51, %41 : vector<16x128xf32>
    %cst_23 = arith.constant 0.254829586 : f32
    %53 = vector.broadcast %cst_23 : f32 to vector<16x128xf32>
    %54 = arith.addf %52, %53 : vector<16x128xf32>
    %55 = arith.mulf %54, %41 : vector<16x128xf32>
    %cst_24 = arith.constant 0.000000e+00 : f32
    %56 = vector.broadcast %cst_24 : f32 to vector<16x128xf32>
    %57 = arith.subf %56, %35 : vector<16x128xf32>
    %58 = arith.mulf %57, %35 : vector<16x128xf32>
    %59 = math.exp %58 : vector<16x128xf32>
    %60 = arith.mulf %55, %59 : vector<16x128xf32>
    %cst_25 = arith.constant 1.000000e+00 : f32
    %61 = vector.broadcast %cst_25 : f32 to vector<16x128xf32>
    %62 = arith.subf %61, %60 : vector<16x128xf32>
    %cst_26 = arith.constant 0.000000e+00 : f32
    %63 = vector.broadcast %cst_26 : f32 to vector<16x128xf32>
    %64 = arith.cmpf oge, %34, %63 : vector<16x128xf32>
    %cst_27 = arith.constant 0.000000e+00 : f32
    %65 = vector.broadcast %cst_27 : f32 to vector<16x128xf32>
    %66 = arith.subf %65, %62 : vector<16x128xf32>
    %67 = arith.select %64, %62, %66 : vector<16x128xi1>, vector<16x128xf32>
    %cst_28 = arith.constant 1.000000e+00 : f32
    %68 = vector.broadcast %cst_28 : f32 to vector<16x128xf32>
    %69 = arith.addf %68, %67 : vector<16x128xf32>
    %70 = arith.mulf %32, %69 : vector<16x128xf32>
    %71 = arith.truncf %70 : vector<16x128xf32> to vector<16x128xbf16>
    %c0_29 = arith.constant 0 : index
    %c0_30 = arith.constant 0 : index
    %72 = vector.load %arg6[%c0_29, %c0_30] : memref<128x32xbf16, #tpu.memory_space<vmem>>, vector<128x32xbf16>
    %cst_31 = arith.constant dense<0.000000e+00> : vector<16x32xf32>
    %73 = tpu.matmul %71, %72, %cst_31 {dimension_numbers = #tpu.dot_dimension_numbers<[1], [0], [0], [1], [0, 0, 1, 1], [], []>} : vector<16x128xbf16>, vector<128x32xbf16>, vector<16x32xf32> -> vector<16x32xf32>
    %c0_32 = arith.constant 0 : index
    %c0_33 = arith.constant 0 : index
    %74 = vector.load %arg7[%c0_32, %c0_33] : memref<1x32xf32, #tpu.memory_space<vmem>>, vector<1x32xf32>
    %75 = vector.broadcast %74 : vector<1x32xf32> to vector<16x32xf32>
    %76 = arith.addf %73, %75 : vector<16x32xf32>
    %c0_34 = arith.constant 0 : index
    %c0_35 = arith.constant 0 : index
    %77 = vector.load %arg8[%c0_34, %c0_35] : memref<16x32xf32, #tpu.memory_space<vmem>>, vector<16x32xf32>
    tpu.vector_store %arg8[%c0_34, %c0_35], %76 {strides = array<i32>} : memref<16x32xf32, #tpu.memory_space<vmem>>, vector<16x32xf32>,
    return
  }
  func.func @transform_0(%arg0: i32) -> (i32, i32) {
    %c0_i32 = arith.constant 0 : i32
    %c0_i32_0 = arith.constant 0 : i32
    return %arg0, %c0_i32 : i32, i32
  }
  func.func @transform_1(%arg0: i32) -> (i32, i32) {
    %c0_i32 = arith.constant 0 : i32
    %c0_i32_0 = arith.constant 0 : i32
    %c0_i32_1 = arith.constant 0 : i32
    return %c0_i32, %c0_i32_0 : i32, i32
  }
  func.func @transform_2(%arg0: i32) -> (i32, i32) {
    %c0_i32 = arith.constant 0 : i32
    %c0_i32_0 = arith.constant 0 : i32
    %c0_i32_1 = arith.constant 0 : i32
    return %c0_i32, %c0_i32_0 : i32, i32
  }
  func.func @transform_3(%arg0: i32) -> (i32, i32) {
    %c0_i32 = arith.constant 0 : i32
    %c0_i32_0 = arith.constant 0 : i32
    %c0_i32_1 = arith.constant 0 : i32
    return %c0_i32, %c0_i32_0 : i32, i32
  }
  func.func @transform_4(%arg0: i32) -> (i32, i32) {
    %c0_i32 = arith.constant 0 : i32
    %c0_i32_0 = arith.constant 0 : i32
    %c0_i32_1 = arith.constant 0 : i32
    return %c0_i32, %c0_i32_0 : i32, i32
  }
  func.func @transform_5(%arg0: i32) -> (i32, i32) {
    %c0_i32 = arith.constant 0 : i32
    %c0_i32_0 = arith.constant 0 : i32
    %c0_i32_1 = arith.constant 0 : i32
    return %c0_i32, %c0_i32_0 : i32, i32
  }
  func.func @transform_6(%arg0: i32) -> (i32, i32) {
    %c0_i32 = arith.constant 0 : i32
    %c0_i32_0 = arith.constant 0 : i32
    %c0_i32_1 = arith.constant 0 : i32
    return %c0_i32, %c0_i32_0 : i32, i32
  }
  func.func @transform_7(%arg0: i32) -> (i32, i32) {
    %c0_i32 = arith.constant 0 : i32
    %c0_i32_0 = arith.constant 0 : i32
    return %arg0, %c0_i32 : i32, i32
  }
}

</mosaic_0001>

<llo_original>
// kernel: tpu_custom_call.1
$region0: #{tpu_custom_call.1}
  #allocation0 [shape = 'u32[]', space=smem, size = 0x4, offset = 0x4, fixed_abs, tag = 'smem constant byte address 0x4 - core index']
  #allocation1 [shape = 'u32[144,128]{1,0:T(1,128)}', space=vmem, size = 0x12000, scoped, tag = 'internal scratch']
  %s0 = inlined_call_operand.vmem [shape: f32[16,32], index: 0, kind: input, shape index: {}]
  %s1 = inlined_call_operand.vmem [shape: f32[1,32], index: 1, kind: input, shape index: {}]
  %s2 = inlined_call_operand.vmem [shape: f32[1,32], index: 2, kind: input, shape index: {}]
  %s3 = inlined_call_operand.vmem [shape: bf16[32,128], index: 3, kind: input, shape index: {}]
  %s4 = inlined_call_operand.vmem [shape: f32[1,128], index: 4, kind: input, shape index: {}]
  %s5 = inlined_call_operand.vmem [shape: bf16[128,32], index: 5, kind: input, shape index: {}]
  %s6 = inlined_call_operand.vmem [shape: f32[1,32], index: 6, kind: input, shape index: {}]
  %s7 = inlined_call_operand.hbm [shape: f32[16,32], index: 7, kind: output, shape index: {}]
  %s8 = sld [smem:[#allocation0]]
  $region38: #{tpu_custom_call.1} parent=0
    _
  %s10 = ssub.s32 1, %s8
  %s11 = scalar_select 0, %s10, %s8
  $region1: #{tpu_custom_call.1} parent=0
    #allocation2 [shape = 'u8[8192]{0}', space=vmem, size = 0x2000, scoped, tag = 'output window, operand 0, single buffered']
    #allocation3 [shape = 's32[1]{0}', space=sflag, size = 0x4, scoped, tag = 'scoped memory for tpu_custom_call.1']
    %12 = vsyncpa [#allocation3], 0
    // Predicated region
    $region2: #{tpu_custom_call.1} parent=1 // pred_check
      _
    $region3: #{tpu_custom_call.1} parent=1 // pred_check_branch
      %14 = sbr.rel (0) target = $region5
    $region4: #{tpu_custom_call.1} parent=1 // pred_region
      _
    $region5: #{tpu_custom_call.1} parent=1 // pred_fallthru
      _
    // Predicated region
    $region6: #{tpu_custom_call.1} parent=1 // pred_check
      _
    $region7: #{tpu_custom_call.1} parent=1 // pred_check_branch
      %16 = sbr.rel (0) target = $region9
    $region8: #{tpu_custom_call.1} parent=1 // pred_region
      _
    $region9: #{tpu_custom_call.1} parent=1 // pred_fallthru
      _
    // Predicated region
    $region10: #{tpu_custom_call.1} parent=1 // pred_check
      _
    $region11: #{tpu_custom_call.1} parent=1 // pred_check_branch
      %18 = sbr.rel (0) target = $region13
    $region12: #{tpu_custom_call.1} parent=1 // pred_region
      _
    $region13: #{tpu_custom_call.1} parent=1 // pred_fallthru
      _
    // Predicated region
    $region14: #{tpu_custom_call.1} parent=1 // pred_check
      _
    $region15: #{tpu_custom_call.1} parent=1 // pred_check_branch
      %20 = sbr.rel (0) target = $region17
    $region16: #{tpu_custom_call.1} parent=1 // pred_region
      _
    $region17: #{tpu_custom_call.1} parent=1 // pred_fallthru
      _
    // Predicated region
    $region18: #{tpu_custom_call.1} parent=1 // pred_check
      _
    $region19: #{tpu_custom_call.1} parent=1 // pred_check_branch
      %22 = sbr.rel (0) target = $region21
    $region20: #{tpu_custom_call.1} parent=1 // pred_region
      _
    $region21: #{tpu_custom_call.1} parent=1 // pred_fallthru
      _
    // Predicated region
    $region22: #{tpu_custom_call.1} parent=1 // pred_check
      _
    $region23: #{tpu_custom_call.1} parent=1 // pred_check_branch
      %24 = sbr.rel (0) target = $region25
    $region24: #{tpu_custom_call.1} parent=1 // pred_region
      _
    $region25: #{tpu_custom_call.1} parent=1 // pred_fallthru
      _
    // Predicated region
    $region26: #{tpu_custom_call.1} parent=1 // pred_check
      _
    $region27: #{tpu_custom_call.1} parent=1 // pred_check_branch
      %26 = sbr.rel (0) target = $region29
    $region28: #{tpu_custom_call.1} parent=1 // pred_region
      _
    $region29: #{tpu_custom_call.1} parent=1 // pred_fallthru
      _
    %v28 = vld [vmem:[%s0] sm:$0xff]
    %v29 = vld [vmem:[%s0 + $0x8] sm:$0xff]
    %vm30 = vcmask 261120
    %v31 = vsel %vm30, %v28, 0.0
    %32 = vadd.xlane.f32.xlu0 %v31
    %v33 = vpop.xlane.xlu0 %32
    %v34 = vsel %vm30, %v29, 0.0
    %35 = vadd.xlane.f32.xlu0 %v34
    %v36 = vpop.xlane.xlu0 %35
    %v37 = vrcp.pop 32.0
    %v38 = vmul.f32 %v33, %v37
    %v39 = vmul.f32 %v36, %v37
    %v40 = vsub.f32 %v28, %v38
    %v41 = vsub.f32 %v29, %v39
    %v42 = vmul.f32 %v40, %v40
    %v43 = vmul.f32 %v41, %v41
    %v44 = vsel %vm30, %v42, 0.0
    %45 = vadd.xlane.f32.xlu0 %v44
    %v46 = vpop.xlane.xlu0 %45
    %v47 = vsel %vm30, %v43, 0.0
    %48 = vadd.xlane.f32.xlu0 %v47
    %v49 = vpop.xlane.xlu0 %48
    %v50 = vmul.f32 %v46, %v37
    %v51 = vmul.f32 %v49, %v37
    %v52 = vadd.f32 %v50, 1e-05
    %v53 = vadd.f32 %v51, 1e-05
    %v54 = vrsqrt.pop %v52
    %v55 = vrsqrt.pop %v53
    %v56 = vmul.f32 %v40, %v54
    %v57 = vmul.f32 %v41, %v55
    %v58 = vld [vmem:[%s1] sm:$0x1]
    %v60 = vlaneseq
    %v61 = vshrl.u32 %v60, 7
    %v62 = vsub.s32 0, %v61
    %v63 = vrot.slane %v58, %v62
    %v65 = vmul.f32 %v56, %v63
    %v66 = vmul.f32 %v57, %v63
    %v67 = vld [vmem:[%s2] sm:$0x1]
    %v69 = vlaneseq
    %v70 = vshrl.u32 %v69, 7
    %v71 = vsub.s32 0, %v70
    %v72 = vrot.slane %v67, %v71
    %v74 = vadd.f32 %v65, %v72
    %v75 = vadd.f32 %v66, %v72
    %v76 = vpack.c.bf16 %v75, %v74
    %v77 = vld [vmem:[%s3] sm:$0xf]
    %v78 = vld [vmem:[%s3 + $0x4] sm:$0xf]
    %v79 = vld [vmem:[%s3 + $0x8] sm:$0xf]
    %v80 = vld [vmem:[%s3 + $0xc] sm:$0xf]
    %v81 = vld [vmem:[%s4] sm:$0x1]
    %v83 = vlaneseq
    %v84 = vshrl.u32 %v83, 7
    %v85 = vsub.s32 0, %v84
    %v86 = vrot.slane %v81, %v85
    %v92 = vunpack.c.l.b16 %v77
    %v93 = vunpack.c.l.b16 %v78
    %v94 = vunpack.c.l.b16 %v79
    %v95 = vunpack.c.l.b16 %v80
    %v96 = vpack.c.b16 %v93, %v92
    %v97 = vpack.c.b16 %v95, %v94
    %v101 = vsel %vm30, %v76, 0
    %103 = vmatprep.subr.bf16.mxu0 0
    %104 = vmatpush1.bf16.msra.mxu0 %v96
    %105 = vmatprep.subr.bf16.mxu0 0
    %106 = vmatpush1.bf16.msra.mxu0 %v97
    %107 = vmatprep.subr.bf16.mxu0 0
    %108 = vmatpush1.bf16.msra.mxu0 0
    %109 = vmatprep.subr.bf16.mxu0 0
    %110 = vmatpush1.bf16.msra.mxu0 0
    %111 = vmatprep.subr.bf16.mxu0 0
    %112 = vmatpush1.bf16.msra.mxu0 0
    %113 = vmatprep.subr.bf16.mxu0 0
    %114 = vmatpush1.bf16.msra.mxu0 0
    %115 = vmatprep.subr.bf16.mxu0 0
    %116 = vmatpush1.bf16.msra.mxu0 0
    %117 = vmatprep.subr.bf16.mxu0 0
    %118 = vmatpush1.bf16.msra.mxu0 0
    %119 = vmatprep.subr.bf16.mxu0 0
    %120 = vmatpush1.bf16.msra.mxu0 0
    %121 = vmatprep.subr.bf16.mxu0 0
    %122 = vmatpush1.bf16.msra.mxu0 0
    %123 = vmatprep.subr.bf16.mxu0 0
    %124 = vmatpush1.bf16.msra.mxu0 0
    %125 = vmatprep.subr.bf16.mxu0 0
    %126 = vmatpush1.bf16.msra.mxu0 0
    %127 = vmatprep.subr.bf16.mxu0 0
    %128 = vmatpush1.bf16.msra.mxu0 0
    %129 = vmatprep.subr.bf16.mxu0 0
    %130 = vmatpush1.bf16.msra.mxu0 0
    %131 = vmatprep.subr.bf16.mxu0 0
    %132 = vmatpush1.bf16.msra.mxu0 0
    %133 = vmatprep.subr.bf16.mxu0 0
    %134 = vmatpush1.bf16.msra.mxu0 0
    %135 = vmatprep.mubr.bf16.mxu0 0
    %136 = vmatmul.mubr.bf16.gmra.mrb[0].mxu0 %v101
    %v137 = vpop.f32.mrb[0].mxu0
    %v138 = vadd.f32 %v86, %v137
    %v139 = vpop.f32.mrb[0].mxu0
    %v140 = vpop.f32.mrb[0].mxu0
    %v141 = vadd.f32 %v86, %v140
    %v142 = vpop.f32.mrb[0].mxu0
    %143 = vdwg.mxu0
    %v144 = vmul.f32 %v138, 0.5
    %v145 = vmul.f32 %v141, 0.5
    %v146 = vmul.f32 %v138, 0.70710677
    %v147 = vmul.f32 %v141, 0.70710677
    %v148 = vand.u32 2147483647, %v146
    %v149 = vand.u32 2147483647, %v147
    %v150 = vmul.f32 %v148, 0.3275911
    %v151 = vmul.f32 %v149, 0.3275911
    %v152 = vadd.f32 %v150, 1.0
    %v153 = vadd.f32 %v151, 1.0
    %v154 = vrcp.pop %v152
    %v155 = vmul.f32 1.0, %v154
    %v156 = vrcp.pop %v153
    %v157 = vmul.f32 1.0, %v156
    %v158 = vmul.f32 %v155, 1.0614054
    %v159 = vmul.f32 %v157, 1.0614054
    %v160 = vadd.f32 %v158, -1.4531521
    %v161 = vadd.f32 %v159, -1.4531521
    %v162 = vmul.f32 %v160, %v155
    %v163 = vmul.f32 %v161, %v157
    %v164 = vadd.f32 %v162, 1.4214138
    %v165 = vadd.f32 %v163, 1.4214138
    %v166 = vmul.f32 %v164, %v155
    %v167 = vmul.f32 %v165, %v157
    %v168 = vadd.f32 %v166, -0.28449672
    %v169 = vadd.f32 %v167, -0.28449672
    %v170 = vmul.f32 %v168, %v155
    %v171 = vmul.f32 %v169, %v157
    %v172 = vadd.f32 %v170, 0.2548296
    %v173 = vadd.f32 %v171, 0.2548296
    %v174 = vmul.f32 %v172, %v155
    %v175 = vmul.f32 %v173, %v157
    %v176 = vsub.f32 0.0, %v148
    %v177 = vsub.f32 0.0, %v149
    %v178 = vmul.f32 %v176, %v148
    %v179 = vmul.f32 %v177, %v149
    %v180 = vmul.f32 %v178, 1.442695
    %v181 = vpow.pop %v180
    %v182 = vmul.f32 %v179, 1.442695
    %v183 = vpow.pop %v182
    %v184 = vmul.f32 %v174, %v181
    %v185 = vmul.f32 %v175, %v183
    %v186 = vsub.f32 1.0, %v184
    %v187 = vsub.f32 1.0, %v185
    %vm188 = vcmp.ge.f32.partialorder %v146, 0.0
    %vm189 = vcmp.ge.f32.partialorder %v147, 0.0
    %v190 = vsub.f32 0.0, %v186
    %v191 = vsub.f32 0.0, %v187
    %v192 = vsel %vm188, %v186, %v190
    %v193 = vsel %vm189, %v187, %v191
    %v194 = vadd.f32 %v192, 1.0
    %v195 = vadd.f32 %v193, 1.0
    %v196 = vmul.f32 %v144, %v194
    %v197 = vmul.f32 %v145, %v195
    %v198 = vpack.c.bf16 %v197, %v196
    %v199 = vld [vmem:[%s5] sm:$0xf]
    %v200 = vld [vmem:[%s5 + $0x4] sm:$0xf]
    %v201 = vld [vmem:[%s5 + $0x8] sm:$0xf]
    %v202 = vld [vmem:[%s5 + $0xc] sm:$0xf]
    %v203 = vld [vmem:[%s5 + $0x10] sm:$0xf]
    %v204 = vld [vmem:[%s5 + $0x14] sm:$0xf]
    %v205 = vld [vmem:[%s5 + $0x18] sm:$0xf]
    %v206 = vld [vmem:[%s5 + $0x1c] sm:$0xf]
    %v207 = vld [vmem:[%s5 + $0x20] sm:$0xf]
    %v208 = vld [vmem:[%s5 + $0x24] sm:$0xf]
    %v209 = vld [vmem:[%s5 + $0x28] sm:$0xf]
    %v210 = vld [vmem:[%s5 + $0x2c] sm:$0xf]
    %v211 = vld [vmem:[%s5 + $0x30] sm:$0xf]
    %v212 = vld [vmem:[%s5 + $0x34] sm:$0xf]
    %v213 = vld [vmem:[%s5 + $0x38] sm:$0xf]
    %v214 = vld [vmem:[%s5 + $0x3c] sm:$0xf]
    %v215 = vld [vmem:[%s6] sm:$0x1]
    %v217 = vlaneseq
    %v218 = vshrl.u32 %v217, 7
    %v219 = vsub.s32 0, %v218
    %v220 = vrot.slane %v215, %v219
    %v238 = vunpack.c.l.b16 %v199
    %v239 = vunpack.c.l.b16 %v200
    %v240 = vunpack.c.l.b16 %v201
    %v241 = vunpack.c.l.b16 %v202
    %v242 = vunpack.c.l.b16 %v203
    %v243 = vunpack.c.l.b16 %v204
    %v244 = vunpack.c.l.b16 %v205
    %v245 = vunpack.c.l.b16 %v206
    %v246 = vunpack.c.l.b16 %v207
    %v247 = vunpack.c.l.b16 %v208
    %v248 = vunpack.c.l.b16 %v209
    %v249 = vunpack.c.l.b16 %v210
    %v250 = vunpack.c.l.b16 %v211
    %v251 = vunpack.c.l.b16 %v212
    %v252 = vunpack.c.l.b16 %v213
    %v253 = vunpack.c.l.b16 %v214
    %v254 = vpack.c.b16 %v239, %v238
    %v255 = vpack.c.b16 %v241, %v240
    %v256 = vpack.c.b16 %v243, %v242
    %v257 = vpack.c.b16 %v245, %v244
    %v258 = vpack.c.b16 %v247, %v246
    %v259 = vpack.c.b16 %v249, %v248
    %v260 = vpack.c.b16 %v251, %v250
    %v261 = vpack.c.b16 %v253, %v252
    %270 = vmatprep.subr.bf16.mxu0 0
    %271 = vmatpush1.bf16.msra.mxu0 %v254
    %272 = vmatprep.subr.bf16.mxu0 0
    %273 = vmatpush1.bf16.msra.mxu0 %v255
    %274 = vmatprep.subr.bf16.mxu0 0
    %275 = vmatpush1.bf16.msra.mxu0 %v256
    %276 = vmatprep.subr.bf16.mxu0 0
    %277 = vmatpush1.bf16.msra.mxu0 %v257
    %278 = vmatprep.subr.bf16.mxu0 0
    %279 = vmatpush1.bf16.msra.mxu0 %v258
    %280 = vmatprep.subr.bf16.mxu0 0
    %281 = vmatpush1.bf16.msra.mxu0 %v259
    %282 = vmatprep.subr.bf16.mxu0 0
    %283 = vmatpush1.bf16.msra.mxu0 %v260
    %284 = vmatprep.subr.bf16.mxu0 0
    %285 = vmatpush1.bf16.msra.mxu0 %v261
    %286 = vmatprep.subr.bf16.mxu0 0
    %287 = vmatpush1.bf16.msra.mxu0 0
    %288 = vmatprep.subr.bf16.mxu0 0
    %289 = vmatpush1.bf16.msra.mxu0 0
    %290 = vmatprep.subr.bf16.mxu0 0
    %291 = vmatpush1.bf16.msra.mxu0 0
    %292 = vmatprep.subr.bf16.mxu0 0
    %293 = vmatpush1.bf16.msra.mxu0 0
    %294 = vmatprep.subr.bf16.mxu0 0
    %295 = vmatpush1.bf16.msra.mxu0 0
    %296 = vmatprep.subr.bf16.mxu0 0
    %297 = vmatpush1.bf16.msra.mxu0 0
    %298 = vmatprep.subr.bf16.mxu0 0
    %299 = vmatpush1.bf16.msra.mxu0 0
    %300 = vmatprep.subr.bf16.mxu0 0
    %301 = vmatpush1.bf16.msra.mxu0 0
    %302 = vmatprep.mubr.bf16.mxu0 0
    %303 = vmatmul.mubr.bf16.gmra.mrb[0].mxu0 %v198
    %v304 = vpop.f32.mrb[0].mxu0
    %v305 = vadd.f32 %v220, %v304
    %v306 = vpop.f32.mrb[0].mxu0
    %v307 = vpop.f32.mrb[0].mxu0
    %v308 = vadd.f32 %v220, %v307
    %v309 = vpop.f32.mrb[0].mxu0
    %310 = vdwg.mxu0
    %311 = vst.msk [vmem:[#allocation2] sm:$0xff] %vm30, %v305
    %312 = vst.msk [vmem:[#allocation2 + $0x8] sm:$0xff] %vm30, %v308
    // Predicated region
    $region30: #{tpu_custom_call.1} parent=1 // pred_check
      _
    $region31: #{tpu_custom_call.1} parent=1 // pred_check_branch
      %314 = sbr.rel (0) target = $region33
    $region32: #{tpu_custom_call.1} parent=1 // pred_region
      %s316 = ssub.s32 256, 256
      %317 = vsyncadd [#allocation3], %s316
      %s318 = sshll.u32 [#allocation2], 4
      %s319 = int_to_ptr.vmem [resolvable:$true] %s318
      %324 = dma.vmem_to_hbm [thread:$0]  %s319, 256, %s7, [#allocation3], 128, 128, 8
    $region33: #{tpu_custom_call.1} parent=1 // pred_fallthru
      _
    // Predicated region
    $region34: #{tpu_custom_call.1} parent=1 // pred_check
      _
    $region35: #{tpu_custom_call.1} parent=1 // pred_check_branch
      %326 = sbr.rel (0) target = $region37
    $region36: #{tpu_custom_call.1} parent=1 // pred_region
      %327 = dma.done [#allocation3], 256
    $region37: #{tpu_custom_call.1} parent=1 // pred_fallthru
      _
    %328 = vsyncpa [#allocation3], 1

</llo_original>
